<compile_context>
chip_gen: v5e
topology: v5e:2x2
jax: 0.10.0
libtpu: 0.0.40
codegen_flags: <defaults>
</compile_context>

<pallas_src>
import math

import jax
import jax.numpy as jnp
from jax.experimental import pallas as pl
from jax.experimental.pallas import tpu as pltpu


def _round_up(x, m):
    return ((x + m - 1) // m) * m


# --------------------------------------------------------------------------- #
# Kernel: one batch tile -> two hidden layers + fused (mean | log_std) head.
# --------------------------------------------------------------------------- #
def _policy_kernel(state_ref, w1_ref, b1_ref, w2_ref, b2_ref, wh_ref, bh_ref,
                   mean_ref, log_std_ref):
    cd = w1_ref.dtype                      # MXU input dtype (bf16 or f32)
    a_pad = mean_ref.shape[-1]             # static lane-aligned head split

    x = state_ref[...]

    # fc1 + ReLU (f32 accumulation on the MXU)
    h1 = jnp.dot(x, w1_ref[...], preferred_element_type=jnp.float32) + b1_ref[...]
    h1 = jnp.maximum(h1, 0.0)

    # fc2 + ReLU
    h2 = jnp.dot(h1.astype(cd), w2_ref[...],
                 preferred_element_type=jnp.float32) + b2_ref[...]
    h2 = jnp.maximum(h2, 0.0)

    # fused head: one [TM, H_pad] x [H_pad, 2*A_pad] matmul
    y = jnp.dot(h2.astype(cd), wh_ref[...],
                preferred_element_type=jnp.float32) + bh_ref[...]

    # mean lanes [0, A_pad), log_std lanes [A_pad, 2*A_pad): 128-aligned slices
    mean_ref[...] = y[:, :a_pad].astype(mean_ref.dtype)
    log_std_ref[...] = jnp.clip(y[:, a_pad:], -20.0, 2.0).astype(log_std_ref.dtype)


# --------------------------------------------------------------------------- #
# One-time parameter preparation (hoisted out of the forward path).
# --------------------------------------------------------------------------- #
def prepare_params(raw, *, compute_dtype=jnp.bfloat16,
                   hidden_align=128, lane_align=128):
    """raw: dict of [in_features, out_features] weights and [1, out] biases.

    Returns pre-fused / pre-padded / pre-cast tensors ready for the kernel.
    """
    S, H = raw["w1"].shape
    A = raw["wm"].shape[1]
    H_pad = _round_up(H, hidden_align)
    A_pad = _round_up(A, lane_align)

    def pad2(a, rows, cols):
        return jnp.pad(a, ((0, rows - a.shape[0]), (0, cols - a.shape[1])))

    w1 = pad2(raw["w1"], S, H_pad)
    b1 = pad2(raw["b1"], 1, H_pad)           # padded bias columns are zero
    w2 = pad2(raw["w2"], H_pad, H_pad)
    b2 = pad2(raw["b2"], 1, H_pad)

    # fused head: mean -> columns [0, A), log_std -> columns [A_pad, A_pad+A)
    wh = jnp.zeros((H_pad, 2 * A_pad), jnp.float32)
    wh = wh.at[:H, :A].set(raw["wm"]).at[:H, A_pad:A_pad + A].set(raw["wls"])
    bh = jnp.zeros((1, 2 * A_pad), jnp.float32)
    bh = bh.at[:, :A].set(raw["bm"]).at[:, A_pad:A_pad + A].set(raw["bls"])

    cd = compute_dtype
    return {
        "w1": w1.astype(cd), "b1": b1.astype(jnp.float32),
        "w2": w2.astype(cd), "b2": b2.astype(jnp.float32),
        "wh": wh.astype(cd), "bh": bh.astype(jnp.float32),
        "state_dim": S, "action_dim": A,
        "h_pad": H_pad, "a_pad": A_pad,
        "compute_dtype": cd,
    }


# --------------------------------------------------------------------------- #
# Forward wrapper.
# --------------------------------------------------------------------------- #
def policy_network_forward(state, prepped, *, tile_m=512):
    """state: [B, state_dim] float32. prepped: output of prepare_params()."""
    B, S = state.shape
    assert S == prepped["state_dim"]
    A = prepped["action_dim"]
    A_pad = prepped["a_pad"]
    H_pad = prepped["h_pad"]
    cd = prepped["compute_dtype"]

    # 16-row alignment for packed bf16 sublanes, 8 for f32.
    row_align = 16 if jnp.dtype(cd).itemsize < 4 else 8
    tm = min(_round_up(tile_m, row_align), _round_up(B, row_align))
    b_pad = _round_up(B, tm)
    x = state if b_pad == B else jnp.pad(state, ((0, b_pad - B), (0, 0)))
    x = x.astype(cd)

    const = lambda i: (0, 0)
    # Weights never change across grid steps -> single-buffer them.
    wspec = lambda shape: pl.BlockSpec(shape, const, pipeline_mode=pl.Buffered(1))

    out_mean, out_ls = pl.pallas_call(
        _policy_kernel,
        out_shape=(jax.ShapeDtypeStruct((b_pad, A_pad), jnp.float32),
                   jax.ShapeDtypeStruct((b_pad, A_pad), jnp.float32)),
        grid=(b_pad // tm,),
        in_specs=[
            pl.BlockSpec((tm, S), lambda i: (i, 0)),   # state tile (pipelined)
            wspec((S, H_pad)),                          # W1
            wspec((1, H_pad)),                          # b1
            wspec((H_pad, H_pad)),                      # W2
            wspec((1, H_pad)),                          # b2
            wspec((H_pad, 2 * A_pad)),                  # fused head weight
            wspec((1, 2 * A_pad)),                      # fused head bias
        ],
        out_specs=(pl.BlockSpec((tm, A_pad), lambda i: (i, 0)),
                   pl.BlockSpec((tm, A_pad), lambda i: (i, 0))),
        compiler_params=pltpu.CompilerParams(
            dimension_semantics=("parallel",)),
    )(x, prepped["w1"], prepped["b1"], prepped["w2"], prepped["b2"],
      prepped["wh"], prepped["bh"])

    return out_mean[:B, :A], out_ls[:B, :A]


# --------------------------------------------------------------------------- #
# Init (mimics nn.Linear uniform(-1/sqrt(fan_in), +)) and pure-JAX reference.
# --------------------------------------------------------------------------- #
def init_params(key, state_dim, action_dim, hidden_dim):
    def linear(k, fan_in, fan_out):
        kw, kb = jax.random.split(k)
        bound = 1.0 / math.sqrt(fan_in)
        w = jax.random.uniform(kw, (fan_in, fan_out), jnp.float32, -bound, bound)
        b = jax.random.uniform(kb, (1, fan_out), jnp.float32, -bound, bound)
        return w, b

    k1, k2, k3, k4 = jax.random.split(key, 4)
    w1, b1 = linear(k1, state_dim, hidden_dim)
    w2, b2 = linear(k2, hidden_dim, hidden_dim)
    wm, bm = linear(k3, hidden_dim, action_dim)
    wls, bls = linear(k4, hidden_dim, action_dim)
    return {"w1": w1, "b1": b1, "w2": w2, "b2": b2,
            "wm": wm, "bm": bm, "wls": wls, "bls": bls}


def _reference_forward(state, p):
    hp = jax.lax.Precision.HIGHEST
    h1 = jnp.maximum(jnp.dot(state, p["w1"], precision=hp) + p["b1"], 0.0)
    h2 = jnp.maximum(jnp.dot(h1, p["w2"], precision=hp) + p["b2"], 0.0)
    mean = jnp.dot(h2, p["wm"], precision=hp) + p["bm"]
    log_std = jnp.clip(jnp.dot(h2, p["wls"], precision=hp) + p["bls"], -20.0, 2.0)
    return mean, log_std


if __name__ == "__main__":
    key = jax.random.PRNGKey(0)
    k_params, k_state, k_rest = jax.random.split(key, 3)

    # --- test 1: small shapes, default bf16 compute path ---------------------
    B, S, A, H = 2, 8, 4, 32
    raw = init_params(k_params, S, A, H)
    state = jax.random.normal(k_state, (B, S), jnp.float32)
    mean_ref, log_std_ref = _reference_forward(state, raw)

    pp_bf16 = prepare_params(raw)                       # default: bf16 MXU inputs
    m_bf, ls_bf = policy_network_forward(state, pp_bf16)
    jax.block_until_ready((m_bf, ls_bf))
    assert m_bf.shape == (B, A) and ls_bf.shape == (B, A)
    assert jnp.allclose(m_bf, mean_ref, atol=5e-2, rtol=5e-2), "bf16 mean mismatch"
    assert jnp.allclose(ls_bf, log_std_ref, atol=5e-2, rtol=5e-2), "bf16 log_std mismatch"

    # --- test 2: f32 compute path, tight tolerance ---------------------------
    pp_f32 = prepare_params(raw, compute_dtype=jnp.float32)
    m_f, ls_f = policy_network_forward(state, pp_f32)
    jax.block_until_ready((m_f, ls_f))
    assert jnp.allclose(m_f, mean_ref, atol=1e-4, rtol=1e-4), "f32 mean mismatch"
    assert jnp.allclose(ls_f, log_std_ref, atol=1e-4, rtol=1e-4), "f32 log_std mismatch"

    # --- test 3: larger batch exercising multi-tile grid + batch padding -----
    B2, S2, A2, H2 = 200, 16, 6, 64
    kp2, ks2 = jax.random.split(k_rest)
    raw2 = init_params(kp2, S2, A2, H2)
    state2 = jax.random.normal(ks2, (B2, S2), jnp.float32)
    pp2 = prepare_params(raw2, compute_dtype=jnp.float32)
    m2, ls2 = policy_network_forward(state2, pp2, tile_m=64)   # grid = 4 steps
    jax.block_until_ready((m2, ls2))
    m2_ref, ls2_ref = _reference_forward(state2, raw2)
    assert m2.shape == (B2, A2) and ls2.shape == (B2, A2)
    assert jnp.allclose(m2, m2_ref, atol=1e-4, rtol=1e-4), "mean mismatch (grid)"
    assert jnp.allclose(ls2, ls2_ref, atol=1e-4, rtol=1e-4), "log_std mismatch (grid)"

    print("KERNEL_OK")
</pallas_src>

<mosaic_0001>
module attributes {stable_mosaic.version = 11 : i64} {
  func.func @_policy_kernel(%arg0: i32, %arg1: memref<16x8xbf16, #tpu.memory_space<vmem>>, %arg2: memref<8x128xbf16, #tpu.memory_space<vmem>>, %arg3: memref<1x128xf32, #tpu.memory_space<vmem>>, %arg4: memref<128x128xbf16, #tpu.memory_space<vmem>>, %arg5: memref<1x128xf32, #tpu.memory_space<vmem>>, %arg6: memref<128x256xbf16, #tpu.memory_space<vmem>>, %arg7: memref<1x256xf32, #tpu.memory_space<vmem>>, %arg8: memref<16x128xf32, #tpu.memory_space<vmem>>, %arg9: memref<16x128xf32, #tpu.memory_space<vmem>>) attributes {dimension_semantics = [#tpu.dimension_semantics<parallel>], iteration_bounds = array<i64: 1>, scalar_prefetch = 0 : i64, scratch_operands = 0 : i64, tpu.core_type = #tpu.core_type<tc>, window_params = [{transform_indices = @transform_0, window_bounds = array<i64: 16, 8>}, {pipeline_mode = #tpu.pipeline_mode<synchronous>, transform_indices = @transform_1, window_bounds = array<i64: 8, 128>}, {pipeline_mode = #tpu.pipeline_mode<synchronous>, transform_indices = @transform_2, window_bounds = array<i64: 1, 128>}, {pipeline_mode = #tpu.pipeline_mode<synchronous>, transform_indices = @transform_3, window_bounds = array<i64: 128, 128>}, {pipeline_mode = #tpu.pipeline_mode<synchronous>, transform_indices = @transform_4, window_bounds = array<i64: 1, 128>}, {pipeline_mode = #tpu.pipeline_mode<synchronous>, transform_indices = @transform_5, window_bounds = array<i64: 128, 256>}, {pipeline_mode = #tpu.pipeline_mode<synchronous>, transform_indices = @transform_6, window_bounds = array<i64: 1, 256>}, {transform_indices = @transform_7, window_bounds = array<i64: 16, 128>}, {transform_indices = @transform_8, window_bounds = array<i64: 16, 128>}]} {
    %c0 = arith.constant 0 : index
    %c0_0 = arith.constant 0 : index
    %0 = vector.load %arg1[%c0, %c0_0] : memref<16x8xbf16, #tpu.memory_space<vmem>>, vector<16x8xbf16>
    %c0_1 = arith.constant 0 : index
    %c0_2 = arith.constant 0 : index
    %1 = vector.load %arg2[%c0_1, %c0_2] : memref<8x128xbf16, #tpu.memory_space<vmem>>, vector<8x128xbf16>
    %cst = arith.constant dense<0.000000e+00> : vector<16x128xf32>
    %2 = tpu.matmul %0, %1, %cst {dimension_numbers = #tpu.dot_dimension_numbers<[1], [0], [0], [1], [0, 0, 1, 1], [], []>} : vector<16x8xbf16>, vector<8x128xbf16>, vector<16x128xf32> -> vector<16x128xf32>
    %c0_3 = arith.constant 0 : index
    %c0_4 = arith.constant 0 : index
    %3 = vector.load %arg3[%c0_3, %c0_4] : memref<1x128xf32, #tpu.memory_space<vmem>>, vector<1x128xf32>
    %4 = vector.broadcast %3 : vector<1x128xf32> to vector<16x128xf32>
    %5 = arith.addf %2, %4 : vector<16x128xf32>
    %cst_5 = arith.constant 0.000000e+00 : f32
    %6 = vector.broadcast %cst_5 : f32 to vector<16x128xf32>
    %7 = arith.maximumf %5, %6 : vector<16x128xf32>
    %8 = arith.truncf %7 : vector<16x128xf32> to vector<16x128xbf16>
    %c0_6 = arith.constant 0 : index
    %c0_7 = arith.constant 0 : index
    %9 = vector.load %arg4[%c0_6, %c0_7] : memref<128x128xbf16, #tpu.memory_space<vmem>>, vector<128x128xbf16>
    %cst_8 = arith.constant dense<0.000000e+00> : vector<16x128xf32>
    %10 = tpu.matmul %8, %9, %cst_8 {dimension_numbers = #tpu.dot_dimension_numbers<[1], [0], [0], [1], [0, 0, 1, 1], [], []>} : vector<16x128xbf16>, vector<128x128xbf16>, vector<16x128xf32> -> vector<16x128xf32>
    %c0_9 = arith.constant 0 : index
    %c0_10 = arith.constant 0 : index
    %11 = vector.load %arg5[%c0_9, %c0_10] : memref<1x128xf32, #tpu.memory_space<vmem>>, vector<1x128xf32>
    %12 = vector.broadcast %11 : vector<1x128xf32> to vector<16x128xf32>
    %13 = arith.addf %10, %12 : vector<16x128xf32>
    %cst_11 = arith.constant 0.000000e+00 : f32
    %14 = vector.broadcast %cst_11 : f32 to vector<16x128xf32>
    %15 = arith.maximumf %13, %14 : vector<16x128xf32>
    %16 = arith.truncf %15 : vector<16x128xf32> to vector<16x128xbf16>
    %c0_12 = arith.constant 0 : index
    %c0_13 = arith.constant 0 : index
    %17 = vector.load %arg6[%c0_12, %c0_13] : memref<128x256xbf16, #tpu.memory_space<vmem>>, vector<128x256xbf16>
    %cst_14 = arith.constant dense<0.000000e+00> : vector<16x256xf32>
    %18 = tpu.matmul %16, %17, %cst_14 {dimension_numbers = #tpu.dot_dimension_numbers<[1], [0], [0], [1], [0, 0, 1, 1], [], []>} : vector<16x128xbf16>, vector<128x256xbf16>, vector<16x256xf32> -> vector<16x256xf32>
    %c0_15 = arith.constant 0 : index
    %c0_16 = arith.constant 0 : index
    %19 = vector.load %arg7[%c0_15, %c0_16] : memref<1x256xf32, #tpu.memory_space<vmem>>, vector<1x256xf32>
    %20 = vector.broadcast %19 : vector<1x256xf32> to vector<16x256xf32>
    %21 = arith.addf %18, %20 : vector<16x256xf32>
    %22 = vector.extract_strided_slice %21 {offsets = [0, 0], sizes = [16, 128], strides = [1, 1]} : vector<16x256xf32> to vector<16x128xf32>
    %c0_17 = arith.constant 0 : index
    %c0_18 = arith.constant 0 : index
    %23 = vector.load %arg8[%c0_17, %c0_18] : memref<16x128xf32, #tpu.memory_space<vmem>>, vector<16x128xf32>
    tpu.vector_store %arg8[%c0_17, %c0_18], %22 {strides = array<i32>} : memref<16x128xf32, #tpu.memory_space<vmem>>, vector<16x128xf32>,
    %24 = vector.extract_strided_slice %21 {offsets = [0, 128], sizes = [16, 128], strides = [1, 1]} : vector<16x256xf32> to vector<16x128xf32>
    %cst_19 = arith.constant -2.000000e+01 : f32
    %cst_20 = arith.constant 2.000000e+00 : f32
    %25 = vector.broadcast %cst_19 : f32 to vector<16x128xf32>
    %26 = arith.maximumf %25, %24 : vector<16x128xf32>
    %27 = vector.broadcast %cst_20 : f32 to vector<16x128xf32>
    %28 = arith.minimumf %27, %26 : vector<16x128xf32>
    %c0_21 = arith.constant 0 : index
    %c0_22 = arith.constant 0 : index
    %29 = vector.load %arg9[%c0_21, %c0_22] : memref<16x128xf32, #tpu.memory_space<vmem>>, vector<16x128xf32>
    tpu.vector_store %arg9[%c0_21, %c0_22], %28 {strides = array<i32>} : memref<16x128xf32, #tpu.memory_space<vmem>>, vector<16x128xf32>,
    return
  }
  func.func @transform_0(%arg0: i32) -> (i32, i32) {
    %c0_i32 = arith.constant 0 : i32
    %c0_i32_0 = arith.constant 0 : i32
    return %arg0, %c0_i32 : i32, i32
  }
  func.func @transform_1(%arg0: i32) -> (i32, i32) {
    %c0_i32 = arith.constant 0 : i32
    %c0_i32_0 = arith.constant 0 : i32
    %c0_i32_1 = arith.constant 0 : i32
    return %c0_i32, %c0_i32_0 : i32, i32
  }
  func.func @transform_2(%arg0: i32) -> (i32, i32) {
    %c0_i32 = arith.constant 0 : i32
    %c0_i32_0 = arith.constant 0 : i32
    %c0_i32_1 = arith.constant 0 : i32
    return %c0_i32, %c0_i32_0 : i32, i32
  }
  func.func @transform_3(%arg0: i32) -> (i32, i32) {
    %c0_i32 = arith.constant 0 : i32
    %c0_i32_0 = arith.constant 0 : i32
    %c0_i32_1 = arith.constant 0 : i32
    return %c0_i32, %c0_i32_0 : i32, i32
  }
  func.func @transform_4(%arg0: i32) -> (i32, i32) {
    %c0_i32 = arith.constant 0 : i32
    %c0_i32_0 = arith.constant 0 : i32
    %c0_i32_1 = arith.constant 0 : i32
    return %c0_i32, %c0_i32_0 : i32, i32
  }
  func.func @transform_5(%arg0: i32) -> (i32, i32) {
    %c0_i32 = arith.constant 0 : i32
    %c0_i32_0 = arith.constant 0 : i32
    %c0_i32_1 = arith.constant 0 : i32
    return %c0_i32, %c0_i32_0 : i32, i32
  }
  func.func @transform_6(%arg0: i32) -> (i32, i32) {
    %c0_i32 = arith.constant 0 : i32
    %c0_i32_0 = arith.constant 0 : i32
    %c0_i32_1 = arith.constant 0 : i32
    return %c0_i32, %c0_i32_0 : i32, i32
  }
  func.func @transform_7(%arg0: i32) -> (i32, i32) {
    %c0_i32 = arith.constant 0 : i32
    %c0_i32_0 = arith.constant 0 : i32
    return %arg0, %c0_i32 : i32, i32
  }
  func.func @transform_8(%arg0: i32) -> (i32, i32) {
    %c0_i32 = arith.constant 0 : i32
    %c0_i32_0 = arith.constant 0 : i32
    return %arg0, %c0_i32 : i32, i32
  }
}

</mosaic_0001>

<llo_original>
// kernel: tpu_custom_call.1
$region0: #{tpu_custom_call.1}
  #allocation0 [shape = 'u32[]', space=smem, size = 0x4, offset = 0x4, fixed_abs, tag = 'smem constant byte address 0x4 - core index']
  #allocation1 [shape = 'u32[72,128]{1,0:T(1,128)}', space=vmem, size = 0x9000, scoped, tag = 'internal scratch']
  %s0 = inlined_call_operand.vmem [shape: bf16[16,8], index: 0, kind: input, shape index: {}]
  %s1 = inlined_call_operand.vmem [shape: bf16[8,128], index: 1, kind: input, shape index: {}]
  %s2 = inlined_call_operand.vmem [shape: f32[1,128], index: 2, kind: input, shape index: {}]
  %s3 = inlined_call_operand.hbm [shape: bf16[128,128], index: 3, kind: input, shape index: {}]
  %s4 = inlined_call_operand.vmem [shape: f32[1,128], index: 4, kind: input, shape index: {}]
  %s5 = inlined_call_operand.hbm [shape: bf16[128,256], index: 5, kind: input, shape index: {}]
  %s6 = inlined_call_operand.vmem [shape: f32[1,256], index: 6, kind: input, shape index: {}]
  %s7 = inlined_call_operand.hbm [shape: f32[16,128], index: 7, kind: output, shape index: {0}]
  %s8 = inlined_call_operand.hbm [shape: f32[16,128], index: 8, kind: output, shape index: {1}]
  %9 = xla_tuple %s7, %s8
  %s10 = sld [smem:[#allocation0]]
  $region54: #{tpu_custom_call.1} parent=0
    _
  %s12 = ssub.s32 1, %s10
  %s13 = scalar_select 0, %s12, %s10
  $region1: #{tpu_custom_call.1} parent=0
    #allocation2 [shape = 'u8[32768]{0}', space=vmem, size = 0x8000, scoped, tag = 'input window, operand 3, single buffered']
    #allocation3 [shape = 's32[1]{0}', space=sflag, size = 0x4, scoped, tag = 'scoped memory for tpu_custom_call.1']
    #allocation4 [shape = 's32[1]{0}', space=sflag, size = 0x4, scoped, tag = 'scoped memory for tpu_custom_call.1']
    #allocation5 [shape = 'u8[65536]{0}', space=vmem, size = 0x10000, scoped, tag = 'input window, operand 5, single buffered']
    #allocation6 [shape = 's32[1]{0}', space=sflag, size = 0x4, scoped, tag = 'scoped memory for tpu_custom_call.1']
    #allocation7 [shape = 'u8[8192]{0}', space=vmem, size = 0x2000, scoped, tag = 'output window, operand 0, single buffered']
    #allocation8 [shape = 'u8[8192]{0}', space=vmem, size = 0x2000, scoped, tag = 'output window, operand 1, single buffered']
    #allocation9 [shape = 's32[1]{0}', space=sflag, size = 0x4, scoped, tag = 'scoped memory for tpu_custom_call.1']
    %14 = vsyncpa [#allocation3], 0
    %15 = vsyncpa [#allocation6], 0
    %16 = vsyncpa [#allocation4], 0
    %17 = vsyncpa [#allocation9], 0
    // Predicated region
    $region2: #{tpu_custom_call.1} parent=1 // pred_check
      _
    $region3: #{tpu_custom_call.1} parent=1 // pred_check_branch
      %19 = sbr.rel (0) target = $region5
    $region4: #{tpu_custom_call.1} parent=1 // pred_region
      _
    $region5: #{tpu_custom_call.1} parent=1 // pred_fallthru
      _
    // Predicated region
    $region6: #{tpu_custom_call.1} parent=1 // pred_check
      _
    $region7: #{tpu_custom_call.1} parent=1 // pred_check_branch
      %21 = sbr.rel (0) target = $region9
    $region8: #{tpu_custom_call.1} parent=1 // pred_region
      _
    $region9: #{tpu_custom_call.1} parent=1 // pred_fallthru
      _
    // Predicated region
    $region10: #{tpu_custom_call.1} parent=1 // pred_check
      _
    $region11: #{tpu_custom_call.1} parent=1 // pred_check_branch
      %23 = sbr.rel (0) target = $region13
    $region12: #{tpu_custom_call.1} parent=1 // pred_region
      _
    $region13: #{tpu_custom_call.1} parent=1 // pred_fallthru
      _
    // Predicated region
    $region14: #{tpu_custom_call.1} parent=1 // pred_check
      _
    $region15: #{tpu_custom_call.1} parent=1 // pred_check_branch
      %25 = sbr.rel (0) target = $region17
    $region16: #{tpu_custom_call.1} parent=1 // pred_region
      %27 = vsyncadd [#allocation3], 0
      %s28 = sshll.u32 %s3, 4
      %s29 = int_to_ptr.hbm [resolvable:$true] %s28
      %s30 = sshll.u32 [#allocation2], 4
      %s31 = int_to_ptr.vmem [resolvable:$true] %s30
      %36 = dma.hbm_to_vmem [thread:$0]  %s29, 1024, %s31, [#allocation3], 64, 64, 4
    $region17: #{tpu_custom_call.1} parent=1 // pred_fallthru
      _
    // Predicated region
    $region18: #{tpu_custom_call.1} parent=1 // pred_check
      _
    $region19: #{tpu_custom_call.1} parent=1 // pred_check_branch
      %38 = sbr.rel (0) target = $region21
    $region20: #{tpu_custom_call.1} parent=1 // pred_region
      _
    $region21: #{tpu_custom_call.1} parent=1 // pred_fallthru
      _
    // Predicated region
    $region22: #{tpu_custom_call.1} parent=1 // pred_check
      _
    $region23: #{tpu_custom_call.1} parent=1 // pred_check_branch
      %40 = sbr.rel (0) target = $region25
    $region24: #{tpu_custom_call.1} parent=1 // pred_region
      %42 = vsyncadd [#allocation6], 0
      %s43 = sshll.u32 %s5, 4
      %s44 = int_to_ptr.hbm [resolvable:$true] %s43
      %s45 = sshll.u32 [#allocation5], 4
      %s46 = int_to_ptr.vmem [resolvable:$true] %s45
      %51 = dma.hbm_to_vmem [thread:$0]  %s44, 2048, %s46, [#allocation6], 128, 128, 8
    $region25: #{tpu_custom_call.1} parent=1 // pred_fallthru
      _
    // Predicated region
    $region26: #{tpu_custom_call.1} parent=1 // pred_check
      _
    $region27: #{tpu_custom_call.1} parent=1 // pred_check_branch
      %53 = sbr.rel (0) target = $region29
    $region28: #{tpu_custom_call.1} parent=1 // pred_region
      _
    $region29: #{tpu_custom_call.1} parent=1 // pred_fallthru
      _
    // Predicated region
    $region30: #{tpu_custom_call.1} parent=1 // pred_check
      _
    $region31: #{tpu_custom_call.1} parent=1 // pred_check_branch
      %55 = sbr.rel (0) target = $region33
    $region32: #{tpu_custom_call.1} parent=1 // pred_region
      %57 = dma.done [#allocation3], 1024
    $region33: #{tpu_custom_call.1} parent=1 // pred_fallthru
      _
    // Predicated region
    $region34: #{tpu_custom_call.1} parent=1 // pred_check
      _
    $region35: #{tpu_custom_call.1} parent=1 // pred_check_branch
      %59 = sbr.rel (0) target = $region37
    $region36: #{tpu_custom_call.1} parent=1 // pred_region
      %61 = dma.done [#allocation6], 2048
    $region37: #{tpu_custom_call.1} parent=1 // pred_fallthru
      _
    %v63 = vld [vmem:[%s0] sm:$0xf]
    %v64 = vld [vmem:[%s0 + $0x4] sm:$0xf]
    %v65 = vld [vmem:[%s1] sm:$0xf]
    %v66 = vld [vmem:[%s2] sm:$0x1]
    %v68 = vperm.slane %v66, 0
    %v72 = vunpack.c.l.b16 %v63
    %v73 = vunpack.c.l.b16 %v64
    %v74 = vpack.c.b16 %v73, %v72
    %vm75 = vcmask 64512
    %v77 = vsel %vm75, %v74, 0
    %vm79 = vcmask 1043456
    %v81 = vsel %vm79, %v65, 0
    %83 = vmatpush.bf16.msra.mxu0 0
    %84 = vmatpush.bf16.msra.mxu0 0
    %85 = vmatpush.bf16.msra.mxu0 0
    %86 = vmatpush.bf16.msra.mxu0 0
    %87 = vmatpush.bf16.msra.mxu0 0
    %88 = vmatpush.bf16.msra.mxu0 0
    %89 = vmatpush.bf16.msra.mxu0 0
    %90 = vmatpush.bf16.msra.mxu0 %v81
    %91 = vmatmul.bf16.gmra.mxu0 %v77
    %v92 = vpop.f32.mrf.mxu0
    %v93 = vadd.f32 %v68, %v92
    %v94 = vpop.f32.mrf.mxu0
    %v95 = vadd.f32 %v68, %v94
    %96 = vdwg.mxu0
    %v97 = vmax.f32 %v93, 0.0
    %v98 = vmax.f32 %v95, 0.0
    %v99 = vpack.c.bf16 %v98, %v97
    %v100 = vld [vmem:[#allocation2] sm:$0xf]
    %v101 = vld [vmem:[#allocation2 + $0x4] sm:$0xf]
    %v102 = vld [vmem:[#allocation2 + $0x8] sm:$0xf]
    %v103 = vld [vmem:[#allocation2 + $0xc] sm:$0xf]
    %v104 = vld [vmem:[#allocation2 + $0x10] sm:$0xf]
    %v105 = vld [vmem:[#allocation2 + $0x14] sm:$0xf]
    %v106 = vld [vmem:[#allocation2 + $0x18] sm:$0xf]
    %v107 = vld [vmem:[#allocation2 + $0x1c] sm:$0xf]
    %v108 = vld [vmem:[#allocation2 + $0x20] sm:$0xf]
    %v109 = vld [vmem:[#allocation2 + $0x24] sm:$0xf]
    %v110 = vld [vmem:[#allocation2 + $0x28] sm:$0xf]
    %v111 = vld [vmem:[#allocation2 + $0x2c] sm:$0xf]
    %v112 = vld [vmem:[#allocation2 + $0x30] sm:$0xf]
    %v113 = vld [vmem:[#allocation2 + $0x34] sm:$0xf]
    %v114 = vld [vmem:[#allocation2 + $0x38] sm:$0xf]
    %v115 = vld [vmem:[#allocation2 + $0x3c] sm:$0xf]
    %v116 = vld [vmem:[%s4] sm:$0x1]
    %v118 = vperm.slane %v116, 0
    %v136 = vunpack.c.l.b16 %v100
    %v137 = vunpack.c.l.b16 %v101
    %v138 = vunpack.c.l.b16 %v102
    %v139 = vunpack.c.l.b16 %v103
    %v140 = vunpack.c.l.b16 %v104
    %v141 = vunpack.c.l.b16 %v105
    %v142 = vunpack.c.l.b16 %v106
    %v143 = vunpack.c.l.b16 %v107
    %v144 = vunpack.c.l.b16 %v108
    %v145 = vunpack.c.l.b16 %v109
    %v146 = vunpack.c.l.b16 %v110
    %v147 = vunpack.c.l.b16 %v111
    %v148 = vunpack.c.l.b16 %v112
    %v149 = vunpack.c.l.b16 %v113
    %v150 = vunpack.c.l.b16 %v114
    %v151 = vunpack.c.l.b16 %v115
    %v152 = vpack.c.b16 %v137, %v136
    %v153 = vpack.c.b16 %v139, %v138
    %v154 = vpack.c.b16 %v141, %v140
    %v155 = vpack.c.b16 %v143, %v142
    %v156 = vpack.c.b16 %v145, %v144
    %v157 = vpack.c.b16 %v147, %v146
    %v158 = vpack.c.b16 %v149, %v148
    %v159 = vpack.c.b16 %v151, %v150
    %168 = vmatpush.bf16.msra.mxu0 %v159
    %169 = vmatpush.bf16.msra.mxu0 %v158
    %170 = vmatpush.bf16.msra.mxu0 %v157
    %171 = vmatpush.bf16.msra.mxu0 %v156
    %172 = vmatpush.bf16.msra.mxu0 %v155
    %173 = vmatpush.bf16.msra.mxu0 %v154
    %174 = vmatpush.bf16.msra.mxu0 %v153
    %175 = vmatpush.bf16.msra.mxu0 %v152
    %176 = vmatmul.bf16.gmra.mxu0 %v99
    %v177 = vpop.f32.mrf.mxu0
    %v178 = vadd.f32 %v118, %v177
    %v179 = vpop.f32.mrf.mxu0
    %v180 = vadd.f32 %v118, %v179
    %181 = vdwg.mxu0
    %v182 = vmax.f32 %v178, 0.0
    %v183 = vmax.f32 %v180, 0.0
    %v184 = vpack.c.bf16 %v183, %v182
    %v185 = vld [vmem:[#allocation5] sm:$0xff]
    %v186 = vld [vmem:[#allocation5 + $0x8] sm:$0xff]
    %v187 = vld [vmem:[#allocation5 + $0x10] sm:$0xff]
    %v188 = vld [vmem:[#allocation5 + $0x18] sm:$0xff]
    %v189 = vld [vmem:[#allocation5 + $0x20] sm:$0xff]
    %v190 = vld [vmem:[#allocation5 + $0x28] sm:$0xff]
    %v191 = vld [vmem:[#allocation5 + $0x30] sm:$0xff]
    %v192 = vld [vmem:[#allocation5 + $0x38] sm:$0xff]
    %v193 = vld [vmem:[#allocation5 + $0x40] sm:$0xff]
    %v194 = vld [vmem:[#allocation5 + $0x48] sm:$0xff]
    %v195 = vld [vmem:[#allocation5 + $0x50] sm:$0xff]
    %v196 = vld [vmem:[#allocation5 + $0x58] sm:$0xff]
    %v197 = vld [vmem:[#allocation5 + $0x60] sm:$0xff]
    %v198 = vld [vmem:[#allocation5 + $0x68] sm:$0xff]
    %v199 = vld [vmem:[#allocation5 + $0x70] sm:$0xff]
    %v200 = vld [vmem:[#allocation5 + $0x78] sm:$0xff]
    %v201 = vld [vmem:[%s6] sm:$0x3]
    %v203 = vperm.slane %v201, 0
    %v204 = vperm.slane %v201, 1
    %v223 = vunpack.c.l.b16 %v185
    %v224 = vunpack.c.h.b16 %v185
    %v225 = vunpack.c.l.b16 %v186
    %v226 = vunpack.c.h.b16 %v186
    %v227 = vunpack.c.l.b16 %v187
    %v228 = vunpack.c.h.b16 %v187
    %v229 = vunpack.c.l.b16 %v188
    %v230 = vunpack.c.h.b16 %v188
    %v231 = vunpack.c.l.b16 %v189
    %v232 = vunpack.c.h.b16 %v189
    %v233 = vunpack.c.l.b16 %v190
    %v234 = vunpack.c.h.b16 %v190
    %v235 = vunpack.c.l.b16 %v191
    %v236 = vunpack.c.h.b16 %v191
    %v237 = vunpack.c.l.b16 %v192
    %v238 = vunpack.c.h.b16 %v192
    %v239 = vunpack.c.l.b16 %v193
    %v240 = vunpack.c.h.b16 %v193
    %v241 = vunpack.c.l.b16 %v194
    %v242 = vunpack.c.h.b16 %v194
    %v243 = vunpack.c.l.b16 %v195
    %v244 = vunpack.c.h.b16 %v195
    %v245 = vunpack.c.l.b16 %v196
    %v246 = vunpack.c.h.b16 %v196
    %v247 = vunpack.c.l.b16 %v197
    %v248 = vunpack.c.h.b16 %v197
    %v249 = vunpack.c.l.b16 %v198
    %v250 = vunpack.c.h.b16 %v198
    %v251 = vunpack.c.l.b16 %v199
    %v252 = vunpack.c.h.b16 %v199
    %v253 = vunpack.c.l.b16 %v200
    %v254 = vunpack.c.h.b16 %v200
    %v255 = vpack.c.b16 %v225, %v223
    %v256 = vpack.c.b16 %v226, %v224
    %v257 = vpack.c.b16 %v229, %v227
    %v258 = vpack.c.b16 %v230, %v228
    %v259 = vpack.c.b16 %v233, %v231
    %v260 = vpack.c.b16 %v234, %v232
    %v261 = vpack.c.b16 %v237, %v235
    %v262 = vpack.c.b16 %v238, %v236
    %v263 = vpack.c.b16 %v241, %v239
    %v264 = vpack.c.b16 %v242, %v240
    %v265 = vpack.c.b16 %v245, %v243
    %v266 = vpack.c.b16 %v246, %v244
    %v267 = vpack.c.b16 %v249, %v247
    %v268 = vpack.c.b16 %v250, %v248
    %v269 = vpack.c.b16 %v253, %v251
    %v270 = vpack.c.b16 %v254, %v252
    %287 = vmatpush.bf16.msra.mxu0 %v269
    %288 = vmatpush.bf16.msra.mxu0 %v267
    %289 = vmatpush.bf16.msra.mxu0 %v265
    %290 = vmatpush.bf16.msra.mxu0 %v263
    %291 = vmatpush.bf16.msra.mxu0 %v261
    %292 = vmatpush.bf16.msra.mxu0 %v259
    %293 = vmatpush.bf16.msra.mxu0 %v257
    %294 = vmatpush.bf16.msra.mxu0 %v255
    %295 = vmatmul.bf16.gmra.mxu0 %v184
    %v296 = vpop.f32.mrf.mxu0
    %v297 = vadd.f32 %v203, %v296
    %v298 = vpop.f32.mrf.mxu0
    %v299 = vadd.f32 %v203, %v298
    %300 = vdwg.mxu0
    %301 = vmatpush.bf16.msra.mxu0 %v270
    %302 = vmatpush.bf16.msra.mxu0 %v268
    %303 = vmatpush.bf16.msra.mxu0 %v266
    %304 = vmatpush.bf16.msra.mxu0 %v264
    %305 = vmatpush.bf16.msra.mxu0 %v262
    %306 = vmatpush.bf16.msra.mxu0 %v260
    %307 = vmatpush.bf16.msra.mxu0 %v258
    %308 = vmatpush.bf16.msra.mxu0 %v256
    %309 = vmatmul.bf16.gmra.mxu0 %v184
    %v310 = vpop.f32.mrf.mxu0
    %v311 = vadd.f32 %v204, %v310
    %v312 = vpop.f32.mrf.mxu0
    %v313 = vadd.f32 %v204, %v312
    %314 = vdwg.mxu0
    %315 = vst [vmem:[#allocation7] sm:$0xff] %v297
    %316 = vst [vmem:[#allocation7 + $0x8] sm:$0xff] %v299
    %v317 = vmax.f32 %v311, -20.0
    %v318 = vmax.f32 %v313, -20.0
    %v319 = vmin.f32 %v317, 2.0
    %v320 = vmin.f32 %v318, 2.0
    %321 = vst [vmem:[#allocation8] sm:$0xff] %v319
    %322 = vst [vmem:[#allocation8 + $0x8] sm:$0xff] %v320
    // Predicated region
    $region38: #{tpu_custom_call.1} parent=1 // pred_check
      _
    $region39: #{tpu_custom_call.1} parent=1 // pred_check_branch
      %324 = sbr.rel (0) target = $region41
    $region40: #{tpu_custom_call.1} parent=1 // pred_region
      %326 = vsyncadd [#allocation4], 0
      %s327 = sshll.u32 [#allocation7], 4
      %s328 = int_to_ptr.vmem [resolvable:$true] %s327
      %s329 = sshll.u32 %s7, 4
      %s330 = int_to_ptr.hbm [resolvable:$true] %s329
      %335 = dma.vmem_to_hbm [thread:$0]  %s328, 256, %s330, [#allocation4], 128, 128, 8
    $region41: #{tpu_custom_call.1} parent=1 // pred_fallthru
      _
    // Predicated region
    $region42: #{tpu_custom_call.1} parent=1 // pred_check
      _
    $region43: #{tpu_custom_call.1} parent=1 // pred_check_branch
      %337 = sbr.rel (0) target = $region45
    $region44: #{tpu_custom_call.1} parent=1 // pred_region
      %339 = vsyncadd [#allocation9], 0
      %s340 = sshll.u32 [#allocation8], 4
      %s341 = int_to_ptr.vmem [resolvable:$true] %s340
      %s342 = sshll.u32 %s8, 4
      %s343 = int_to_ptr.hbm [resolvable:$true] %s342
      %348 = dma.vmem_to_hbm [thread:$0]  %s341, 256, %s343, [#allocation9], 128, 128, 8
    $region45: #{tpu_custom_call.1} parent=1 // pred_fallthru
      _
    // Predicated region
    $region46: #{tpu_custom_call.1} parent=1 // pred_check
      _
    $region47: #{tpu_custom_call.1} parent=1 // pred_check_branch
      %350 = sbr.rel (0) target = $region49
    $region48: #{tpu_custom_call.1} parent=1 // pred_region
      %352 = dma.done [#allocation4], 256
    $region49: #{tpu_custom_call.1} parent=1 // pred_fallthru
      _
    // Predicated region
    $region50: #{tpu_custom_call.1} parent=1 // pred_check
      _
    $region51: #{tpu_custom_call.1} parent=1 // pred_check_branch
      %354 = sbr.rel (0) target = $region53
    $region52: #{tpu_custom_call.1} parent=1 // pred_region
      %356 = dma.done [#allocation9], 256
    $region53: #{tpu_custom_call.1} parent=1 // pred_fallthru
      _
    %357 = vsyncpa [#allocation3], 1
    %358 = vsyncpa [#allocation6], 1
    %359 = vsyncpa [#allocation4], 1
    %360 = vsyncpa [#allocation9], 1

</llo_original>
